<compile_context>
chip_gen: v6e
topology: v6e:2x2x1
jax: 0.10.0
libtpu: 0.0.40
codegen_flags: <defaults>
</compile_context>

<pallas_src>
import jax
import jax.numpy as jnp
from jax.experimental import pallas as pl
from jax.experimental.pallas import tpu as pltpu

_TARGET_BLOCK_BYTES = 4 * 1024 * 1024  # ~4 MiB per block (x4 with dbl-buffer)


def _swish_kernel(x_ref, o_ref):
    # Compute in f32 (sigmoid's exp/reciprocal runs on the EUP slot, free
    # relative to DMA for this memory-bound op); cast once on store.
    x = x_ref[...].astype(jnp.float32)
    o_ref[...] = (x * jax.nn.sigmoid(x)).astype(o_ref.dtype)


def _choose_layout(total: int, itemsize: int):
    """Pick (rows, lane, row_tile) for a lane-dense, pad-free tiling.

    Returns None if no clean multiple-of-128 factorisation exists.
    """
    # Minimum sublane tile depends on dtype packing (f32: 8, bf16: 16, i8: 32).
    sub = {4: 8, 2: 16, 1: 32}.get(itemsize, 8)

    for lane in (2048, 1024, 512, 256, 128):
        if total % lane:
            continue
        rows = total // lane
        # Small enough to do in a single block (full array dims are always a
        # legal block shape).
        if rows * lane * itemsize <= _TARGET_BLOCK_BYTES:
            return rows, lane, rows
        # Otherwise tile the rows: largest row tile that (a) divides rows,
        # (b) is a multiple of the sublane quantum, (c) keeps the block
        # around the target size.
        tr_max = max(sub, (_TARGET_BLOCK_BYTES // (lane * itemsize)) // sub * sub)
        for cand in range(tr_max, 0, -sub):
            if rows % cand == 0:
                return rows, lane, cand
    return None


def swish(x: jnp.ndarray) -> jnp.ndarray:
    """Elementwise Swish via a Pallas TPU kernel (NCHW or any layout)."""
    orig_shape = x.shape
    dtype = x.dtype
    total = int(x.size)
    itemsize = jnp.dtype(dtype).itemsize

    layout = _choose_layout(total, itemsize)
    if layout is None:
        # Element count not a multiple of 128: fall back to a single
        # full-array block (legal for any shape; fine for small/odd inputs).
        # TODO(synk): tile the tail separately if such shapes ever get large.
        rows, lane, tr = 1, total, 1
    else:
        rows, lane, tr = layout

    x2d = x.reshape(rows, lane)
    grid = (rows // tr,)

    out2d = pl.pallas_call(
        _swish_kernel,
        out_shape=jax.ShapeDtypeStruct((rows, lane), dtype),
        grid_spec=pltpu.PrefetchScalarGridSpec(
            num_scalar_prefetch=0,
            grid=grid,
            in_specs=[pl.BlockSpec((tr, lane), lambda i: (i, 0))],
            out_specs=pl.BlockSpec((tr, lane), lambda i: (i, 0)),
        ),
        compiler_params=pltpu.CompilerParams(
            dimension_semantics=("parallel",),
            vmem_limit_bytes=48 * 1024 * 1024,
        ),
    )(x2d)

    return out2d.reshape(orig_shape)


swish_jit = jax.jit(swish)


if __name__ == "__main__":
    key = jax.random.PRNGKey(0)

    # Small NCHW input, matching the conv-net usage of Swish in ReXNet.
    x = jax.random.normal(key, (2, 4, 16, 16), dtype=jnp.float32)
    y = jax.block_until_ready(swish_jit(x))
    y_ref = x * jax.nn.sigmoid(x)
    assert y.shape == x.shape and y.dtype == x.dtype
    assert jnp.allclose(y, y_ref, atol=1e-6, rtol=1e-6)

    # Larger input exercising the multi-block (tiled, multi-program) path.
    x2 = jax.random.normal(jax.random.PRNGKey(1), (8, 64, 64, 64), dtype=jnp.float32)
    y2 = jax.block_until_ready(swish_jit(x2))
    y2_ref = x2 * jax.nn.sigmoid(x2)
    assert jnp.allclose(y2, y2_ref, atol=1e-6, rtol=1e-6)

    # bf16 input: dtype preserved end-to-end, sigmoid computed in f32 in-kernel.
    x3 = jax.random.normal(jax.random.PRNGKey(2), (2, 4, 16, 16)).astype(jnp.bfloat16)
    y3 = jax.block_until_ready(swish_jit(x3))
    x3f = x3.astype(jnp.float32)
    y3_ref = (x3f * jax.nn.sigmoid(x3f)).astype(jnp.bfloat16)
    assert y3.dtype == jnp.bfloat16
    assert jnp.allclose(y3.astype(jnp.float32), y3_ref.astype(jnp.float32),
                        atol=1e-2, rtol=1e-2)

    print("KERNEL_OK")
</pallas_src>

<mosaic_0001>
module attributes {stable_mosaic.version = 11 : i64} {
  func.func @_swish_kernel(%arg0: i32, %arg1: memref<1x2048xf32, #tpu.memory_space<vmem>>, %arg2: memref<1x2048xf32, #tpu.memory_space<vmem>>) attributes {dimension_semantics = [#tpu.dimension_semantics<parallel>], iteration_bounds = array<i64: 1>, scalar_prefetch = 0 : i64, scratch_operands = 0 : i64, tpu.core_type = #tpu.core_type<tc>, window_params = [{transform_indices = @transform_0, window_bounds = array<i64: 1, 2048>}, {transform_indices = @transform_1, window_bounds = array<i64: 1, 2048>}]} {
    %c0 = arith.constant 0 : index
    %c0_0 = arith.constant 0 : index
    %0 = vector.load %arg1[%c0, %c0_0] : memref<1x2048xf32, #tpu.memory_space<vmem>>, vector<1x2048xf32>
    %1 = arith.negf %0 : vector<1x2048xf32>
    %2 = math.exp %1 : vector<1x2048xf32>
    %cst = arith.constant 1.000000e+00 : f32
    %3 = vector.broadcast %cst : f32 to vector<1x2048xf32>
    %4 = arith.addf %3, %2 : vector<1x2048xf32>
    %5 = arith.divf %3, %4 : vector<1x2048xf32>
    %6 = arith.mulf %0, %5 : vector<1x2048xf32>
    %c0_1 = arith.constant 0 : index
    %c0_2 = arith.constant 0 : index
    %7 = vector.load %arg2[%c0_1, %c0_2] : memref<1x2048xf32, #tpu.memory_space<vmem>>, vector<1x2048xf32>
    tpu.vector_store %arg2[%c0_1, %c0_2], %6 {strides = array<i32>} : memref<1x2048xf32, #tpu.memory_space<vmem>>, vector<1x2048xf32>,
    return
  }
  func.func @transform_0(%arg0: i32) -> (i32, i32) {
    %c0_i32 = arith.constant 0 : i32
    %c0_i32_0 = arith.constant 0 : i32
    return %arg0, %c0_i32 : i32, i32
  }
  func.func @transform_1(%arg0: i32) -> (i32, i32) {
    %c0_i32 = arith.constant 0 : i32
    %c0_i32_0 = arith.constant 0 : i32
    return %arg0, %c0_i32 : i32, i32
  }
}

</mosaic_0001>

<llo_original>
// kernel: swish.1
$region0: #{swish.1}
  #allocation0 [shape = 'u32[]', space=smem, size = 0x4, offset = 0x4, fixed_abs, tag = 'smem constant byte address 0x4 - core index']
  #allocation1 [shape = 'u32[144,128]{1,0:T(1,128)}', space=vmem, size = 0x12000, scoped, tag = 'internal scratch']
  %s0 = inlined_call_operand.vmem [shape: f32[1,2048], index: 0, kind: input, shape index: {}]
  %s1 = inlined_call_operand.vmem [shape: f32[1,2048], index: 1, kind: output, shape index: {}]
  %s2 = sld [smem:[#allocation0]]
  $region14: #{swish.1} parent=0
    _
  %s4 = ssub.s32 1, %s2
  %s5 = scalar_select 0, %s4, %s2
  // Predicated region
  $region2: #{swish.1} parent=0 // pred_check
    _
  $region3: #{swish.1} parent=0 // pred_check_branch
    %7 = sbr.rel (0) target = $region5
  $region4: #{swish.1} parent=0 // pred_region
    _
  $region5: #{swish.1} parent=0 // pred_fallthru
    _
  %v8 = vld [vmem:[%s0] sm:$0xff]
  %v9 = vld [vmem:[%s0 + $0x8] sm:$0xff]
  %v10 = vxor.u32 %v8, 2147483648
  %v11 = vxor.u32 %v9, 2147483648
  %v12 = vmul.f32 %v10, 1.442695
  %v13 = vpow.pop %v12
  %v14 = vmul.f32 %v11, 1.442695
  %v15 = vpow.pop %v14
  %v16 = vadd.f32 %v13, 1.0
  %v17 = vadd.f32 %v15, 1.0
  %v18 = vrcp.pop %v16
  %v19 = vmul.f32 1.0, %v18
  %v20 = vrcp.pop %v17
  %v21 = vmul.f32 1.0, %v20
  %v22 = vmul.f32 %v8, %v19
  %v23 = vmul.f32 %v9, %v21
  %24 = vst [vmem:[%s1] sm:$0xff] %v22
  %25 = vst [vmem:[%s1 + $0x8] sm:$0xff] %v23
  // Predicated region
  $region6: #{swish.1} parent=0 // pred_check
    _
  $region7: #{swish.1} parent=0 // pred_check_branch
    %27 = sbr.rel (0) target = $region9
  $region8: #{swish.1} parent=0 // pred_region
    _
  $region9: #{swish.1} parent=0 // pred_fallthru
    _
  // Predicated region
  $region10: #{swish.1} parent=0 // pred_check
    _
  $region11: #{swish.1} parent=0 // pred_check_branch
    %29 = sbr.rel (0) target = $region13
  $region12: #{swish.1} parent=0 // pred_region
    _
  $region13: #{swish.1} parent=0 // pred_fallthru
    _

</llo_original>
